<compile_context>
chip_gen: v6e
topology: v6e:2x2x1
jax: 0.10.0
libtpu: 0.0.40
codegen_flags: <defaults>
</compile_context>

<pallas_src>
import math

import jax
import jax.numpy as jnp
from jax.experimental import pallas as pl
from jax.experimental.pallas import tpu as pltpu


def _weighted_l1_kernel(x_ref, t_ref, w_ref, cw_ref, e_ref, out_ref):
    # x/t/out tiles: (TILE_R, W) lane-dense rows, W = anchors_per_row * C.
    x = x_ref[...].astype(jnp.float32)
    t = t_ref[...].astype(jnp.float32)
    t = jnp.where(jnp.isnan(t), x, t)            # target = where(isnan(t), x, t)
    diff = (x - t) * cw_ref[...]                 # (1, W) code-weight row, sublane bcast
    loss = jnp.abs(diff)
    # Per-anchor weights (TILE_R, m0) -> per-element (TILE_R, W) via a constant
    # 0/1 expansion matrix on the MXU (exact lane repeat xC; MXU is idle here).
    w_exp = jnp.dot(w_ref[...], e_ref[...], preferred_element_type=jnp.float32)
    out_ref[...] = (loss * w_exp).astype(out_ref.dtype)


def weighted_l1_loss(inp, target, code_weights=None, weights=None,
                     *, tile_bytes=2 * 1024 * 1024):
    """inp, target: (B, A, C); code_weights: (C,) or None; weights: (B, A) or None."""
    B, A, C = inp.shape
    out_dtype = inp.dtype
    if code_weights is None:
        code_weights = jnp.ones((C,), jnp.float32)
    if weights is None:
        weights = jnp.ones((B, A), jnp.float32)

    # Rows of W lanes, with W a multiple of both 128 (lane width) and C (so the
    # code-weight pattern is row-invariant). m0 = anchors per row.
    m0 = 128 // math.gcd(C, 128)                 # anchors per row
    W = m0 * C                                   # lanes per row (multiple of 128)

    # Pad the anchor dim so A is a multiple of m0 (at most m0 - 1 extra anchors).
    A_pad = ((A + m0 - 1) // m0) * m0
    if A_pad != A:
        p = A_pad - A
        inp = jnp.pad(inp, ((0, 0), (0, p), (0, 0)))
        target = jnp.pad(target, ((0, 0), (0, p), (0, 0)))
        weights = jnp.pad(weights, ((0, 0), (0, p)))

    R = (B * A_pad) // m0                        # total rows (batch folded in)
    x2 = inp.reshape(R, W)                       # free, row-major contiguous
    t2 = target.reshape(R, W)
    w2 = weights.astype(jnp.float32).reshape(R, m0)
    cw_row = jnp.tile(code_weights.astype(jnp.float32), m0).reshape(1, W)
    # expand[k, j] = 1 iff lane j belongs to anchor k of the row.
    expand = (jnp.arange(W, dtype=jnp.int32)[None, :] // C
              == jnp.arange(m0, dtype=jnp.int32)[:, None]).astype(jnp.float32)

    # ~tile_bytes (f32) per data tile; multiple of 8 sublanes; clamp to R
    # (a clamped tile equals the full array dim, which is always legal).
    tile_r = max(8, (tile_bytes // (W * 4)) // 8 * 8)
    tile_r = min(tile_r, R)
    grid = (pl.cdiv(R, tile_r),)                 # tail block is masked by Pallas

    io_spec = pl.BlockSpec((tile_r, W), lambda r: (r, 0))
    w_spec = pl.BlockSpec((tile_r, m0), lambda r: (r, 0))
    cw_spec = pl.BlockSpec((1, W), lambda r: (0, 0))      # fetched once (constant map)
    e_spec = pl.BlockSpec((m0, W), lambda r: (0, 0))      # fetched once (constant map)

    out2 = pl.pallas_call(
        _weighted_l1_kernel,
        out_shape=jax.ShapeDtypeStruct((R, W), out_dtype),
        grid_spec=pltpu.PrefetchScalarGridSpec(
            num_scalar_prefetch=0,
            grid=grid,
            in_specs=[io_spec, io_spec, w_spec, cw_spec, e_spec],
            out_specs=io_spec,
        ),
        compiler_params=pltpu.CompilerParams(
            dimension_semantics=("parallel",),
            vmem_limit_bytes=40 * 1024 * 1024,   # > v5e 16 MiB / v6e-v7x 32 MiB defaults,
        ),                                       #   well under v7x's 64 MiB physical VMEM
    )(x2, t2, w2, cw_row, expand)

    out = out2.reshape(B, A_pad, C)
    if A_pad != A:
        out = out[:, :A, :]
    return out


def weighted_l1_loss_ref(inp, target, code_weights, weights):
    """Pure-JAX reference matching the PyTorch forward."""
    target = jnp.where(jnp.isnan(target), inp, target)
    diff = inp - target
    if code_weights is not None:
        diff = diff * code_weights.reshape(1, 1, -1)
    loss = jnp.abs(diff)
    if weights is not None:
        loss = loss * weights[..., None]
    return loss


if __name__ == "__main__":
    key = jax.random.PRNGKey(0)

    # Case 1: small, exact-fit shape (B=2, A=16, C=8).
    B, A, C = 2, 16, 8
    k1, k2, k3 = jax.random.split(key, 3)
    inp = jax.random.normal(k1, (B, A, C), dtype=jnp.float32)
    target = jax.random.normal(k2, (B, A, C), dtype=jnp.float32)
    target = target.at[0, 3, 5].set(jnp.nan)     # exercise the isnan path
    weights = jax.random.uniform(k3, (B, A), dtype=jnp.float32)
    code_weights = jnp.array([1.0, 1.0, 1.0, 1.0, 1.0, 1.0, 0.5, 0.5],
                             dtype=jnp.float32)

    out = jax.block_until_ready(
        weighted_l1_loss(inp, target, code_weights, weights))
    ref = weighted_l1_loss_ref(inp, target, code_weights, weights)
    assert out.shape == (B, A, C) and out.dtype == inp.dtype
    assert jnp.allclose(out, ref, atol=1e-6, rtol=1e-6)

    # Case 2: odd shape (C=7, A not a multiple of anchors-per-row) to exercise
    # the anchor-padding / general-C path (pcdet-like C=7).
    B2, A2, C2 = 2, 10, 7
    k4, k5, k6 = jax.random.split(jax.random.PRNGKey(1), 3)
    inp2 = jax.random.normal(k4, (B2, A2, C2), dtype=jnp.float32)
    target2 = jax.random.normal(k5, (B2, A2, C2), dtype=jnp.float32)
    target2 = target2.at[1, 2, 3].set(jnp.nan)
    weights2 = jax.random.uniform(k6, (B2, A2), dtype=jnp.float32)
    code_weights2 = jnp.linspace(0.5, 1.5, C2, dtype=jnp.float32)

    out2 = jax.block_until_ready(
        weighted_l1_loss(inp2, target2, code_weights2, weights2))
    ref2 = weighted_l1_loss_ref(inp2, target2, code_weights2, weights2)
    assert out2.shape == (B2, A2, C2)
    assert jnp.allclose(out2, ref2, atol=1e-6, rtol=1e-6)

    print("KERNEL_OK")
</pallas_src>

<mosaic_0001>
module attributes {stable_mosaic.version = 11 : i64} {
  func.func @_weighted_l1_kernel(%arg0: i32, %arg1: memref<2x128xf32, #tpu.memory_space<vmem>>, %arg2: memref<2x128xf32, #tpu.memory_space<vmem>>, %arg3: memref<2x16xf32, #tpu.memory_space<vmem>>, %arg4: memref<1x128xf32, #tpu.memory_space<vmem>>, %arg5: memref<16x128xf32, #tpu.memory_space<vmem>>, %arg6: memref<2x128xf32, #tpu.memory_space<vmem>>) attributes {dimension_semantics = [#tpu.dimension_semantics<parallel>], iteration_bounds = array<i64: 1>, scalar_prefetch = 0 : i64, scratch_operands = 0 : i64, tpu.core_type = #tpu.core_type<tc>, window_params = [{transform_indices = @transform_0, window_bounds = array<i64: 2, 128>}, {transform_indices = @transform_1, window_bounds = array<i64: 2, 128>}, {transform_indices = @transform_2, window_bounds = array<i64: 2, 16>}, {pipeline_mode = #tpu.pipeline_mode<synchronous>, transform_indices = @transform_3, window_bounds = array<i64: 1, 128>}, {pipeline_mode = #tpu.pipeline_mode<synchronous>, transform_indices = @transform_4, window_bounds = array<i64: 16, 128>}, {transform_indices = @transform_5, window_bounds = array<i64: 2, 128>}]} {
    %c0 = arith.constant 0 : index
    %c0_0 = arith.constant 0 : index
    %0 = vector.load %arg1[%c0, %c0_0] : memref<2x128xf32, #tpu.memory_space<vmem>>, vector<2x128xf32>
    %c0_1 = arith.constant 0 : index
    %c0_2 = arith.constant 0 : index
    %1 = vector.load %arg2[%c0_1, %c0_2] : memref<2x128xf32, #tpu.memory_space<vmem>>, vector<2x128xf32>
    %2 = arith.cmpf one, %1, %1 : vector<2x128xf32>
    %3 = arith.select %2, %0, %1 : vector<2x128xi1>, vector<2x128xf32>
    %4 = arith.subf %0, %3 : vector<2x128xf32>
    %c0_3 = arith.constant 0 : index
    %c0_4 = arith.constant 0 : index
    %5 = vector.load %arg4[%c0_3, %c0_4] : memref<1x128xf32, #tpu.memory_space<vmem>>, vector<1x128xf32>
    %6 = vector.broadcast %5 : vector<1x128xf32> to vector<2x128xf32>
    %7 = arith.mulf %4, %6 : vector<2x128xf32>
    %8 = math.absf %7 : vector<2x128xf32>
    %c0_5 = arith.constant 0 : index
    %c0_6 = arith.constant 0 : index
    %9 = vector.load %arg3[%c0_5, %c0_6] : memref<2x16xf32, #tpu.memory_space<vmem>>, vector<2x16xf32>
    %c0_7 = arith.constant 0 : index
    %c0_8 = arith.constant 0 : index
    %10 = vector.load %arg5[%c0_7, %c0_8] : memref<16x128xf32, #tpu.memory_space<vmem>>, vector<16x128xf32>
    %cst = arith.constant dense<0.000000e+00> : vector<2x128xf32>
    %11 = tpu.matmul %9, %10, %cst {dimension_numbers = #tpu.dot_dimension_numbers<[1], [0], [0], [1], [0, 0, 1, 1], [], []>} : vector<2x16xf32>, vector<16x128xf32>, vector<2x128xf32> -> vector<2x128xf32>
    %12 = arith.mulf %8, %11 : vector<2x128xf32>
    %c0_9 = arith.constant 0 : index
    %c0_10 = arith.constant 0 : index
    %13 = vector.load %arg6[%c0_9, %c0_10] : memref<2x128xf32, #tpu.memory_space<vmem>>, vector<2x128xf32>
    tpu.vector_store %arg6[%c0_9, %c0_10], %12 {strides = array<i32>} : memref<2x128xf32, #tpu.memory_space<vmem>>, vector<2x128xf32>,
    return
  }
  func.func @transform_0(%arg0: i32) -> (i32, i32) {
    %c0_i32 = arith.constant 0 : i32
    %c0_i32_0 = arith.constant 0 : i32
    return %arg0, %c0_i32 : i32, i32
  }
  func.func @transform_1(%arg0: i32) -> (i32, i32) {
    %c0_i32 = arith.constant 0 : i32
    %c0_i32_0 = arith.constant 0 : i32
    return %arg0, %c0_i32 : i32, i32
  }
  func.func @transform_2(%arg0: i32) -> (i32, i32) {
    %c0_i32 = arith.constant 0 : i32
    %c0_i32_0 = arith.constant 0 : i32
    return %arg0, %c0_i32 : i32, i32
  }
  func.func @transform_3(%arg0: i32) -> (i32, i32) {
    %c0_i32 = arith.constant 0 : i32
    %c0_i32_0 = arith.constant 0 : i32
    %c0_i32_1 = arith.constant 0 : i32
    return %c0_i32, %c0_i32_0 : i32, i32
  }
  func.func @transform_4(%arg0: i32) -> (i32, i32) {
    %c0_i32 = arith.constant 0 : i32
    %c0_i32_0 = arith.constant 0 : i32
    %c0_i32_1 = arith.constant 0 : i32
    return %c0_i32, %c0_i32_0 : i32, i32
  }
  func.func @transform_5(%arg0: i32) -> (i32, i32) {
    %c0_i32 = arith.constant 0 : i32
    %c0_i32_0 = arith.constant 0 : i32
    return %arg0, %c0_i32 : i32, i32
  }
}

</mosaic_0001>

<llo_original>
// kernel: tpu_custom_call.1
$region0: #{tpu_custom_call.1}
  #allocation0 [shape = 'u32[]', space=smem, size = 0x4, offset = 0x4, fixed_abs, tag = 'smem constant byte address 0x4 - core index']
  #allocation1 [shape = 'u32[144,128]{1,0:T(1,128)}', space=vmem, size = 0x12000, scoped, tag = 'internal scratch']
  %s0 = inlined_call_operand.hbm [shape: f32[2,128], index: 0, kind: input, shape index: {}]
  %s1 = inlined_call_operand.hbm [shape: f32[2,128], index: 1, kind: input, shape index: {}]
  %s2 = inlined_call_operand.vmem [shape: f32[2,16], index: 2, kind: input, shape index: {}]
  %s3 = inlined_call_operand.vmem [shape: f32[1,128], index: 3, kind: input, shape index: {}]
  %s4 = inlined_call_operand.hbm [shape: f32[16,128], index: 4, kind: input, shape index: {}]
  %s5 = inlined_call_operand.hbm [shape: f32[2,128], index: 5, kind: output, shape index: {}]
  %s6 = sld [smem:[#allocation0]]
  $region42: #{tpu_custom_call.1} parent=0
    _
  %s8 = ssub.s32 1, %s6
  %s9 = scalar_select 0, %s8, %s6
  $region1: #{tpu_custom_call.1} parent=0
    #allocation2 [shape = 'u8[1024]{0}', space=vmem, size = 0x400, scoped, tag = 'input window, operand 0, single buffered']
    #allocation3 [shape = 's32[1]{0}', space=sflag, size = 0x4, scoped, tag = 'scoped memory for tpu_custom_call.1']
    #allocation4 [shape = 's32[1]{0}', space=sflag, size = 0x4, scoped, tag = 'scoped memory for tpu_custom_call.1']
    #allocation5 [shape = 'u8[1024]{0}', space=vmem, size = 0x400, scoped, tag = 'input window, operand 1, single buffered']
    #allocation6 [shape = 's32[1]{0}', space=sflag, size = 0x4, scoped, tag = 'scoped memory for tpu_custom_call.1']
    #allocation7 [shape = 'u8[8192]{0}', space=vmem, size = 0x2000, scoped, tag = 'input window, operand 4, single buffered']
    #allocation8 [shape = 'u8[1024]{0}', space=vmem, size = 0x400, scoped, tag = 'output window, operand 0, single buffered']
    %10 = vsyncpa [#allocation3], 0
    %11 = vsyncpa [#allocation6], 0
    %12 = vsyncpa [#allocation4], 0
    // Predicated region
    $region2: #{tpu_custom_call.1} parent=1 // pred_check
      _
    $region3: #{tpu_custom_call.1} parent=1 // pred_check_branch
      %14 = sbr.rel (0) target = $region5
    $region4: #{tpu_custom_call.1} parent=1 // pred_region
      %s16 = ssub.s32 32, 32
      %17 = vsyncadd [#allocation3], %s16
      %s19 = sshll.u32 [#allocation2], 4
      %s20 = int_to_ptr.vmem [resolvable:$true] %s19
      %22 = dma.hbm_to_vmem [thread:$0]  %s0, 32, %s20, [#allocation3]
    $region5: #{tpu_custom_call.1} parent=1 // pred_fallthru
      _
    // Predicated region
    $region6: #{tpu_custom_call.1} parent=1 // pred_check
      _
    $region7: #{tpu_custom_call.1} parent=1 // pred_check_branch
      %24 = sbr.rel (0) target = $region9
    $region8: #{tpu_custom_call.1} parent=1 // pred_region
      %s26 = ssub.s32 32, 32
      %27 = vsyncadd [#allocation6], %s26
      %s29 = sshll.u32 [#allocation5], 4
      %s30 = int_to_ptr.vmem [resolvable:$true] %s29
      %32 = dma.hbm_to_vmem [thread:$0]  %s1, 32, %s30, [#allocation6]
    $region9: #{tpu_custom_call.1} parent=1 // pred_fallthru
      _
    // Predicated region
    $region10: #{tpu_custom_call.1} parent=1 // pred_check
      _
    $region11: #{tpu_custom_call.1} parent=1 // pred_check_branch
      %34 = sbr.rel (0) target = $region13
    $region12: #{tpu_custom_call.1} parent=1 // pred_region
      _
    $region13: #{tpu_custom_call.1} parent=1 // pred_fallthru
      _
    // Predicated region
    $region14: #{tpu_custom_call.1} parent=1 // pred_check
      _
    $region15: #{tpu_custom_call.1} parent=1 // pred_check_branch
      %36 = sbr.rel (0) target = $region17
    $region16: #{tpu_custom_call.1} parent=1 // pred_region
      _
    $region17: #{tpu_custom_call.1} parent=1 // pred_fallthru
      _
    // Predicated region
    $region18: #{tpu_custom_call.1} parent=1 // pred_check
      _
    $region19: #{tpu_custom_call.1} parent=1 // pred_check_branch
      %38 = sbr.rel (0) target = $region21
    $region20: #{tpu_custom_call.1} parent=1 // pred_region
      %s40 = ssub.s32 256, 256
      %41 = vsyncadd [#allocation6], %s40
      %s42 = sshll.u32 [#allocation7], 4
      %s43 = int_to_ptr.vmem [resolvable:$true] %s42
      %48 = dma.hbm_to_vmem [thread:$0]  %s4, 256, %s43, [#allocation6], 128, 128, 8
    $region21: #{tpu_custom_call.1} parent=1 // pred_fallthru
      _
    // Predicated region
    $region22: #{tpu_custom_call.1} parent=1 // pred_check
      _
    $region23: #{tpu_custom_call.1} parent=1 // pred_check_branch
      %50 = sbr.rel (0) target = $region25
    $region24: #{tpu_custom_call.1} parent=1 // pred_region
      %51 = dma.done [#allocation3], 32
    $region25: #{tpu_custom_call.1} parent=1 // pred_fallthru
      _
    // Predicated region
    $region26: #{tpu_custom_call.1} parent=1 // pred_check
      _
    $region27: #{tpu_custom_call.1} parent=1 // pred_check_branch
      %53 = sbr.rel (0) target = $region29
    $region28: #{tpu_custom_call.1} parent=1 // pred_region
      %54 = dma.done [#allocation6], 32
    $region29: #{tpu_custom_call.1} parent=1 // pred_fallthru
      _
    // Predicated region
    $region30: #{tpu_custom_call.1} parent=1 // pred_check
      _
    $region31: #{tpu_custom_call.1} parent=1 // pred_check_branch
      %56 = sbr.rel (0) target = $region33
    $region32: #{tpu_custom_call.1} parent=1 // pred_region
      %57 = dma.done [#allocation6], 256
    $region33: #{tpu_custom_call.1} parent=1 // pred_fallthru
      _
    %v58 = vld [vmem:[#allocation2] sm:$0x3]
    %v59 = vld [vmem:[#allocation5] sm:$0x3]
    %vm60 = vcmp.ne.f32.partialorder %v59, %v59
    %v61 = vsel %vm60, %v58, %v59
    %v62 = vsub.f32 %v58, %v61
    %v63 = vld [vmem:[%s3] sm:$0x1]
    %v65 = vlaneseq
    %v66 = vshrl.u32 %v65, 7
    %v67 = vsub.s32 0, %v66
    %v68 = vrot.slane %v63, %v67
    %v70 = vmul.f32 %v62, %v68
    %v71 = vand.u32 2147483647, %v70
    %v72 = vld [vmem:[%s2] sm:$0x3]
    %v73 = vld [vmem:[#allocation7] sm:$0xff]
    %v74 = vld [vmem:[#allocation7 + $0x8] sm:$0xff]
    %vm75 = vcmask 130048
    %v77 = vsel %vm75, %v72, 0
    %79 = vmatprep.subr.mxu0 0.0
    %80 = vmatpush1.msra.mxu0 0.0
    %81 = vmatprep.subr.mxu0 0.0
    %82 = vmatpush1.msra.mxu0 0.0
    %83 = vmatprep.subr.mxu0 0.0
    %84 = vmatpush1.msra.mxu0 0.0
    %85 = vmatprep.subr.mxu0 0.0
    %86 = vmatpush1.msra.mxu0 0.0
    %87 = vmatprep.subr.mxu0 0.0
    %88 = vmatpush1.msra.mxu0 0.0
    %89 = vmatprep.subr.mxu0 0.0
    %90 = vmatpush1.msra.mxu0 0.0
    %91 = vmatprep.subr.mxu0 0.0
    %92 = vmatpush1.msra.mxu0 0.0
    %93 = vmatprep.subr.mxu0 0.0
    %94 = vmatpush1.msra.mxu0 0.0
    %95 = vmatprep.subr.mxu0 0.0
    %96 = vmatpush1.msra.mxu0 0.0
    %97 = vmatprep.subr.mxu0 0.0
    %98 = vmatpush1.msra.mxu0 0.0
    %99 = vmatprep.subr.mxu0 0.0
    %100 = vmatpush1.msra.mxu0 0.0
    %101 = vmatprep.subr.mxu0 0.0
    %102 = vmatpush1.msra.mxu0 0.0
    %103 = vmatprep.subr.mxu0 0.0
    %104 = vmatpush1.msra.mxu0 0.0
    %105 = vmatprep.subr.mxu0 0.0
    %106 = vmatpush1.msra.mxu0 0.0
    %107 = vmatprep.subr.mxu0 0.0
    %108 = vmatpush1.msra.mxu0 %v74
    %109 = vmatprep.subr.mxu0 0.0
    %110 = vmatpush1.msra.mxu0 %v73
    %111 = vmatprep.subr.mxu0 0.0
    %112 = vmatpush2.msra.mxu0 0.0
    %113 = vmatprep.subr.mxu0 0.0
    %114 = vmatpush2.msra.mxu0 0.0
    %115 = vmatprep.subr.mxu0 0.0
    %116 = vmatpush2.msra.mxu0 0.0
    %117 = vmatprep.subr.mxu0 0.0
    %118 = vmatpush2.msra.mxu0 0.0
    %119 = vmatprep.subr.mxu0 0.0
    %120 = vmatpush2.msra.mxu0 0.0
    %121 = vmatprep.subr.mxu0 0.0
    %122 = vmatpush2.msra.mxu0 0.0
    %123 = vmatprep.subr.mxu0 0.0
    %124 = vmatpush2.msra.mxu0 0.0
    %125 = vmatprep.subr.mxu0 0.0
    %126 = vmatpush2.msra.mxu0 0.0
    %127 = vmatprep.subr.mxu0 0.0
    %128 = vmatpush2.msra.mxu0 0.0
    %129 = vmatprep.subr.mxu0 0.0
    %130 = vmatpush2.msra.mxu0 0.0
    %131 = vmatprep.subr.mxu0 0.0
    %132 = vmatpush2.msra.mxu0 0.0
    %133 = vmatprep.subr.mxu0 0.0
    %134 = vmatpush2.msra.mxu0 0.0
    %135 = vmatprep.subr.mxu0 0.0
    %136 = vmatpush2.msra.mxu0 0.0
    %137 = vmatprep.subr.mxu0 0.0
    %138 = vmatpush2.msra.mxu0 0.0
    %139 = vmatprep.subr.mxu0 0.0
    %140 = vmatpush2.msra.mxu0 0.0
    %141 = vmatprep.subr.mxu0 0.0
    %142 = vmatpush2.msra.mxu0 0.0
    %143 = vmatprep.mubr.f32.mxu0 0.0
    %144 = vmatmul.mubr.f32.gmra.mxu0 %v77
    %v145 = vpop.f32.mrf.mxu0
    %v146 = vadd.f32 0.0, %v145
    %v147 = vpop.f32.mrf.mxu0
    %148 = vdwg.mxu0
    %v149 = vmul.f32 %v71, %v146
    %150 = vst [vmem:[#allocation8] sm:$0x3] %v149
    // Predicated region
    $region34: #{tpu_custom_call.1} parent=1 // pred_check
      _
    $region35: #{tpu_custom_call.1} parent=1 // pred_check_branch
      %152 = sbr.rel (0) target = $region37
    $region36: #{tpu_custom_call.1} parent=1 // pred_region
      %s154 = ssub.s32 32, 32
      %155 = vsyncadd [#allocation4], %s154
      %s157 = sshll.u32 [#allocation8], 4
      %s158 = int_to_ptr.vmem [resolvable:$true] %s157
      %160 = dma.vmem_to_hbm [thread:$0]  %s158, 32, %s5, [#allocation4]
    $region37: #{tpu_custom_call.1} parent=1 // pred_fallthru
      _
    // Predicated region
    $region38: #{tpu_custom_call.1} parent=1 // pred_check
      _
    $region39: #{tpu_custom_call.1} parent=1 // pred_check_branch
      %162 = sbr.rel (0) target = $region41
    $region40: #{tpu_custom_call.1} parent=1 // pred_region
      %163 = dma.done [#allocation4], 32
    $region41: #{tpu_custom_call.1} parent=1 // pred_fallthru
      _
    %164 = vsyncpa [#allocation3], 1
    %165 = vsyncpa [#allocation6], 1
    %166 = vsyncpa [#allocation4], 1

</llo_original>
